<compile_context>
chip_gen: v7x
topology: tpu7x:2x2x1
jax: 0.10.0
libtpu: 0.0.40
codegen_flags: <defaults>
</compile_context>

<pallas_src>
import jax
import jax.numpy as jnp
from jax.experimental import pallas as pl
from jax.experimental.pallas import tpu as pltpu

HIDDEN = 64
SEQ_LEN = 5  # FC expects 64 * 5 inputs, so the module implies T == 5


def rnn_kernel(x_ref, wih_ref, whh_ref, bias_ref, wfc_ref, bfc_ref, o_ref):
    Bb, T, I = x_ref.shape
    H = whh_ref.shape[0]

    # Hoist loop-invariant loads once (the unrolled loop would re-issue vlds).
    whh = whh_ref[...]          # (H, H)
    wfc = wfc_ref[...]          # (T*H, O)
    bias = bias_ref[...]        # (1, H) = b_ih + b_hh (pre-summed in wrapper)

    # Batched input projection for all timesteps: one MXU call, off the
    # recurrent critical path.
    x2d = x_ref[...].reshape(Bb * T, I)                                   # (Bb*T, I)
    xproj = jnp.dot(x2d, wih_ref[...], preferred_element_type=jnp.float32) + bias
    xproj = xproj.reshape(Bb, T, H)                                       # (Bb, T, H)

    # Serial recurrence (T = 5 is static -> unrolled). Only h @ W_hh + tanh
    # remain on the dependent chain; sigmoid(h_t) is stashed for one fused FC.
    h = jnp.zeros((Bb, H), jnp.float32)
    gates = []
    for t in range(T):
        h = jnp.tanh(xproj[:, t, :] +
                     jnp.dot(h, whh, preferred_element_type=jnp.float32))
        gates.append(jax.nn.sigmoid(h))

    # Single K = T*H FC matmul (matches out.view(B, -1) time-major flatten).
    s = jnp.concatenate(gates, axis=-1)                                   # (Bb, T*H)
    o_ref[...] = jnp.dot(s, wfc, preferred_element_type=jnp.float32) + bfc_ref[...]


def rnn_forward(x, w_ih, w_hh, b_ih, b_hh, w_fc, b_fc):
    """x: (B, T, I) float32 (batch_first, like the PyTorch module).
    w_ih: (64, I), w_hh: (64, 64), b_ih/b_hh: (64,),
    w_fc: (O, 64*T), b_fc: (O,)   -- PyTorch parameter layouts.
    Returns (B, O).
    """
    B, T, I = x.shape
    O = w_fc.shape[0]
    H = HIDDEN
    assert T == SEQ_LEN and w_fc.shape[1] == H * T

    # Layout plumbing in plain JAX (no transpose of x needed anymore).
    x_f = x.astype(jnp.float32)                                  # (B, T, I)
    wih_t = jnp.transpose(w_ih).astype(jnp.float32)              # (I, H)
    whh_t = jnp.transpose(w_hh).astype(jnp.float32)              # (H, H)
    wfc_t = jnp.transpose(w_fc).astype(jnp.float32)              # (T*H, O)
    bias = (b_ih + b_hh).reshape(1, H).astype(jnp.float32)       # (1, H)
    bfc = b_fc.reshape(1, O).astype(jnp.float32)                 # (1, O)

    # Batch grid: one block at small B, tiles of <=256 rows (sublane-aligned)
    # when B scales, so v7x's two TensorCores and DMA pipelining kick in.
    block_b = min(B, 256)
    if B % block_b != 0:
        block_b = B
    grid = (B // block_b,)

    return pl.pallas_call(
        rnn_kernel,
        out_shape=jax.ShapeDtypeStruct((B, O), jnp.float32),
        grid=grid,
        in_specs=[
            pl.BlockSpec((block_b, T, I), lambda i: (i, 0, 0)),   # x (batch-tiled)
            pl.BlockSpec((I, H), lambda i: (0, 0)),               # W_ih^T
            pl.BlockSpec((H, H), lambda i: (0, 0)),               # W_hh^T
            pl.BlockSpec((1, H), lambda i: (0, 0)),               # b_ih + b_hh
            pl.BlockSpec((T * H, O), lambda i: (0, 0)),           # W_fc^T
            pl.BlockSpec((1, O), lambda i: (0, 0)),               # b_fc
        ],
        out_specs=pl.BlockSpec((block_b, O), lambda i: (i, 0)),
        compiler_params=pltpu.CompilerParams(
            dimension_semantics=("parallel",)),
    )(x_f, wih_t, whh_t, bias, wfc_t, bfc)


def rnn_reference(x, w_ih, w_hh, b_ih, b_hh, w_fc, b_fc):
    """Pure-JAX reference matching torch semantics."""
    B, T, I = x.shape
    h = jnp.zeros((B, HIDDEN), jnp.float32)
    outs = []
    for t in range(T):
        h = jnp.tanh(x[:, t, :] @ w_ih.T + b_ih + h @ w_hh.T + b_hh)
        outs.append(h)
    flat = jnp.concatenate(outs, axis=-1)          # (B, T*H) == out.view(B, -1)
    s = jax.nn.sigmoid(flat)
    return s @ w_fc.T + b_fc


if __name__ == "__main__":
    key = jax.random.PRNGKey(0)
    B, T, I, O = 2, SEQ_LEN, 16, 10

    ks = jax.random.split(key, 8)
    bound = 1.0 / jnp.sqrt(HIDDEN)
    x = jax.random.normal(ks[0], (B, T, I), dtype=jnp.float32)
    w_ih = jax.random.uniform(ks[1], (HIDDEN, I), minval=-bound, maxval=bound)
    w_hh = jax.random.uniform(ks[2], (HIDDEN, HIDDEN), minval=-bound, maxval=bound)
    b_ih = jax.random.uniform(ks[3], (HIDDEN,), minval=-bound, maxval=bound)
    b_hh = jax.random.uniform(ks[4], (HIDDEN,), minval=-bound, maxval=bound)
    fc_bound = 1.0 / jnp.sqrt(HIDDEN * T)
    w_fc = jax.random.uniform(ks[5], (O, HIDDEN * T), minval=-fc_bound, maxval=fc_bound)
    b_fc = jax.random.uniform(ks[6], (O,), minval=-fc_bound, maxval=fc_bound)

    out = rnn_forward(x, w_ih, w_hh, b_ih, b_hh, w_fc, b_fc)
    out = jax.block_until_ready(out)

    ref = rnn_reference(x, w_ih, w_hh, b_ih, b_hh, w_fc, b_fc)
    assert out.shape == (B, O)
    assert jnp.allclose(out, ref, atol=1e-4, rtol=1e-4), "mismatch vs reference"

    print("KERNEL_OK")
</pallas_src>

<mosaic_0001>
module attributes {stable_mosaic.version = 11 : i64} {
  func.func @rnn_kernel(%arg0: i32, %arg1: memref<2x5x16xf32, #tpu.memory_space<vmem>>, %arg2: memref<16x64xf32, #tpu.memory_space<vmem>>, %arg3: memref<64x64xf32, #tpu.memory_space<vmem>>, %arg4: memref<1x64xf32, #tpu.memory_space<vmem>>, %arg5: memref<320x10xf32, #tpu.memory_space<vmem>>, %arg6: memref<1x10xf32, #tpu.memory_space<vmem>>, %arg7: memref<2x10xf32, #tpu.memory_space<vmem>>) attributes {dimension_semantics = [#tpu.dimension_semantics<parallel>], iteration_bounds = array<i64: 1>, scalar_prefetch = 0 : i64, scratch_operands = 0 : i64, tpu.core_type = #tpu.core_type<tc>, window_params = [{transform_indices = @transform_0, window_bounds = array<i64: 2, 5, 16>}, {pipeline_mode = #tpu.pipeline_mode<synchronous>, transform_indices = @transform_1, window_bounds = array<i64: 16, 64>}, {pipeline_mode = #tpu.pipeline_mode<synchronous>, transform_indices = @transform_2, window_bounds = array<i64: 64, 64>}, {pipeline_mode = #tpu.pipeline_mode<synchronous>, transform_indices = @transform_3, window_bounds = array<i64: 1, 64>}, {pipeline_mode = #tpu.pipeline_mode<synchronous>, transform_indices = @transform_4, window_bounds = array<i64: 320, 10>}, {pipeline_mode = #tpu.pipeline_mode<synchronous>, transform_indices = @transform_5, window_bounds = array<i64: 1, 10>}, {transform_indices = @transform_6, window_bounds = array<i64: 2, 10>}]} {
    %c0 = arith.constant 0 : index
    %c0_0 = arith.constant 0 : index
    %0 = vector.load %arg3[%c0, %c0_0] : memref<64x64xf32, #tpu.memory_space<vmem>>, vector<64x64xf32>
    %c0_1 = arith.constant 0 : index
    %c0_2 = arith.constant 0 : index
    %1 = vector.load %arg5[%c0_1, %c0_2] : memref<320x10xf32, #tpu.memory_space<vmem>>, vector<320x10xf32>
    %c0_3 = arith.constant 0 : index
    %c0_4 = arith.constant 0 : index
    %2 = vector.load %arg4[%c0_3, %c0_4] : memref<1x64xf32, #tpu.memory_space<vmem>>, vector<1x64xf32>
    %c0_5 = arith.constant 0 : index
    %c0_6 = arith.constant 0 : index
    %c0_7 = arith.constant 0 : index
    %3 = vector.load %arg1[%c0_5, %c0_6, %c0_7] : memref<2x5x16xf32, #tpu.memory_space<vmem>>, vector<2x5x16xf32>
    %4 = vector.shape_cast %3 : vector<2x5x16xf32> to vector<10x16xf32>
    %c0_8 = arith.constant 0 : index
    %c0_9 = arith.constant 0 : index
    %5 = vector.load %arg2[%c0_8, %c0_9] : memref<16x64xf32, #tpu.memory_space<vmem>>, vector<16x64xf32>
    %cst = arith.constant dense<0.000000e+00> : vector<10x64xf32>
    %6 = tpu.matmul %4, %5, %cst {dimension_numbers = #tpu.dot_dimension_numbers<[1], [0], [0], [1], [0, 0, 1, 1], [], []>} : vector<10x16xf32>, vector<16x64xf32>, vector<10x64xf32> -> vector<10x64xf32>
    %7 = vector.broadcast %2 : vector<1x64xf32> to vector<10x64xf32>
    %8 = arith.addf %6, %7 : vector<10x64xf32>
    %9 = vector.shape_cast %8 : vector<10x64xf32> to vector<2x5x64xf32>
    %cst_10 = arith.constant 0.000000e+00 : f32
    %10 = vector.broadcast %cst_10 : f32 to vector<2x64xf32>
    %11 = vector.extract_strided_slice %9 {offsets = [0, 0, 0], sizes = [2, 1, 64], strides = [1, 1, 1]} : vector<2x5x64xf32> to vector<2x1x64xf32>
    %12 = vector.shape_cast %11 : vector<2x1x64xf32> to vector<2x64xf32>
    %cst_11 = arith.constant dense<0.000000e+00> : vector<2x64xf32>
    %13 = tpu.matmul %10, %0, %cst_11 {dimension_numbers = #tpu.dot_dimension_numbers<[1], [0], [0], [1], [0, 0, 1, 1], [], []>} : vector<2x64xf32>, vector<64x64xf32>, vector<2x64xf32> -> vector<2x64xf32>
    %14 = arith.addf %12, %13 : vector<2x64xf32>
    %15 = math.tanh %14 : vector<2x64xf32>
    %16 = arith.negf %15 : vector<2x64xf32>
    %17 = math.exp %16 : vector<2x64xf32>
    %cst_12 = arith.constant 1.000000e+00 : f32
    %18 = vector.broadcast %cst_12 : f32 to vector<2x64xf32>
    %19 = arith.addf %18, %17 : vector<2x64xf32>
    %20 = arith.divf %18, %19 : vector<2x64xf32>
    %21 = vector.extract_strided_slice %9 {offsets = [0, 1, 0], sizes = [2, 1, 64], strides = [1, 1, 1]} : vector<2x5x64xf32> to vector<2x1x64xf32>
    %22 = vector.shape_cast %21 : vector<2x1x64xf32> to vector<2x64xf32>
    %cst_13 = arith.constant dense<0.000000e+00> : vector<2x64xf32>
    %23 = tpu.matmul %15, %0, %cst_13 {dimension_numbers = #tpu.dot_dimension_numbers<[1], [0], [0], [1], [0, 0, 1, 1], [], []>} : vector<2x64xf32>, vector<64x64xf32>, vector<2x64xf32> -> vector<2x64xf32>
    %24 = arith.addf %22, %23 : vector<2x64xf32>
    %25 = math.tanh %24 : vector<2x64xf32>
    %26 = arith.negf %25 : vector<2x64xf32>
    %27 = math.exp %26 : vector<2x64xf32>
    %cst_14 = arith.constant 1.000000e+00 : f32
    %28 = vector.broadcast %cst_14 : f32 to vector<2x64xf32>
    %29 = arith.addf %28, %27 : vector<2x64xf32>
    %30 = arith.divf %28, %29 : vector<2x64xf32>
    %31 = vector.extract_strided_slice %9 {offsets = [0, 2, 0], sizes = [2, 1, 64], strides = [1, 1, 1]} : vector<2x5x64xf32> to vector<2x1x64xf32>
    %32 = vector.shape_cast %31 : vector<2x1x64xf32> to vector<2x64xf32>
    %cst_15 = arith.constant dense<0.000000e+00> : vector<2x64xf32>
    %33 = tpu.matmul %25, %0, %cst_15 {dimension_numbers = #tpu.dot_dimension_numbers<[1], [0], [0], [1], [0, 0, 1, 1], [], []>} : vector<2x64xf32>, vector<64x64xf32>, vector<2x64xf32> -> vector<2x64xf32>
    %34 = arith.addf %32, %33 : vector<2x64xf32>
    %35 = math.tanh %34 : vector<2x64xf32>
    %36 = arith.negf %35 : vector<2x64xf32>
    %37 = math.exp %36 : vector<2x64xf32>
    %cst_16 = arith.constant 1.000000e+00 : f32
    %38 = vector.broadcast %cst_16 : f32 to vector<2x64xf32>
    %39 = arith.addf %38, %37 : vector<2x64xf32>
    %40 = arith.divf %38, %39 : vector<2x64xf32>
    %41 = vector.extract_strided_slice %9 {offsets = [0, 3, 0], sizes = [2, 1, 64], strides = [1, 1, 1]} : vector<2x5x64xf32> to vector<2x1x64xf32>
    %42 = vector.shape_cast %41 : vector<2x1x64xf32> to vector<2x64xf32>
    %cst_17 = arith.constant dense<0.000000e+00> : vector<2x64xf32>
    %43 = tpu.matmul %35, %0, %cst_17 {dimension_numbers = #tpu.dot_dimension_numbers<[1], [0], [0], [1], [0, 0, 1, 1], [], []>} : vector<2x64xf32>, vector<64x64xf32>, vector<2x64xf32> -> vector<2x64xf32>
    %44 = arith.addf %42, %43 : vector<2x64xf32>
    %45 = math.tanh %44 : vector<2x64xf32>
    %46 = arith.negf %45 : vector<2x64xf32>
    %47 = math.exp %46 : vector<2x64xf32>
    %cst_18 = arith.constant 1.000000e+00 : f32
    %48 = vector.broadcast %cst_18 : f32 to vector<2x64xf32>
    %49 = arith.addf %48, %47 : vector<2x64xf32>
    %50 = arith.divf %48, %49 : vector<2x64xf32>
    %51 = vector.extract_strided_slice %9 {offsets = [0, 4, 0], sizes = [2, 1, 64], strides = [1, 1, 1]} : vector<2x5x64xf32> to vector<2x1x64xf32>
    %52 = vector.shape_cast %51 : vector<2x1x64xf32> to vector<2x64xf32>
    %cst_19 = arith.constant dense<0.000000e+00> : vector<2x64xf32>
    %53 = tpu.matmul %45, %0, %cst_19 {dimension_numbers = #tpu.dot_dimension_numbers<[1], [0], [0], [1], [0, 0, 1, 1], [], []>} : vector<2x64xf32>, vector<64x64xf32>, vector<2x64xf32> -> vector<2x64xf32>
    %54 = arith.addf %52, %53 : vector<2x64xf32>
    %55 = math.tanh %54 : vector<2x64xf32>
    %56 = arith.negf %55 : vector<2x64xf32>
    %57 = math.exp %56 : vector<2x64xf32>
    %cst_20 = arith.constant 1.000000e+00 : f32
    %58 = vector.broadcast %cst_20 : f32 to vector<2x64xf32>
    %59 = arith.addf %58, %57 : vector<2x64xf32>
    %60 = arith.divf %58, %59 : vector<2x64xf32>
    %61 = tpu.concatenate %20, %30, %40, %50, %60 in 1 : vector<2x64xf32>, vector<2x64xf32>, vector<2x64xf32>, vector<2x64xf32>, vector<2x64xf32> -> vector<2x320xf32>
    %cst_21 = arith.constant dense<0.000000e+00> : vector<2x10xf32>
    %62 = tpu.matmul %61, %1, %cst_21 {dimension_numbers = #tpu.dot_dimension_numbers<[1], [0], [0], [1], [0, 0, 1, 1], [], []>} : vector<2x320xf32>, vector<320x10xf32>, vector<2x10xf32> -> vector<2x10xf32>
    %c0_22 = arith.constant 0 : index
    %c0_23 = arith.constant 0 : index
    %63 = vector.load %arg6[%c0_22, %c0_23] : memref<1x10xf32, #tpu.memory_space<vmem>>, vector<1x10xf32>
    %64 = vector.broadcast %63 : vector<1x10xf32> to vector<2x10xf32>
    %65 = arith.addf %62, %64 : vector<2x10xf32>
    %c0_24 = arith.constant 0 : index
    %c0_25 = arith.constant 0 : index
    %66 = vector.load %arg7[%c0_24, %c0_25] : memref<2x10xf32, #tpu.memory_space<vmem>>, vector<2x10xf32>
    tpu.vector_store %arg7[%c0_24, %c0_25], %65 {strides = array<i32>} : memref<2x10xf32, #tpu.memory_space<vmem>>, vector<2x10xf32>,
    return
  }
  func.func @transform_0(%arg0: i32) -> (i32, i32, i32) {
    %c0_i32 = arith.constant 0 : i32
    %c0_i32_0 = arith.constant 0 : i32
    %c0_i32_1 = arith.constant 0 : i32
    return %arg0, %c0_i32, %c0_i32_0 : i32, i32, i32
  }
  func.func @transform_1(%arg0: i32) -> (i32, i32) {
    %c0_i32 = arith.constant 0 : i32
    %c0_i32_0 = arith.constant 0 : i32
    %c0_i32_1 = arith.constant 0 : i32
    return %c0_i32, %c0_i32_0 : i32, i32
  }
  func.func @transform_2(%arg0: i32) -> (i32, i32) {
    %c0_i32 = arith.constant 0 : i32
    %c0_i32_0 = arith.constant 0 : i32
    %c0_i32_1 = arith.constant 0 : i32
    return %c0_i32, %c0_i32_0 : i32, i32
  }
  func.func @transform_3(%arg0: i32) -> (i32, i32) {
    %c0_i32 = arith.constant 0 : i32
    %c0_i32_0 = arith.constant 0 : i32
    %c0_i32_1 = arith.constant 0 : i32
    return %c0_i32, %c0_i32_0 : i32, i32
  }
  func.func @transform_4(%arg0: i32) -> (i32, i32) {
    %c0_i32 = arith.constant 0 : i32
    %c0_i32_0 = arith.constant 0 : i32
    %c0_i32_1 = arith.constant 0 : i32
    return %c0_i32, %c0_i32_0 : i32, i32
  }
  func.func @transform_5(%arg0: i32) -> (i32, i32) {
    %c0_i32 = arith.constant 0 : i32
    %c0_i32_0 = arith.constant 0 : i32
    %c0_i32_1 = arith.constant 0 : i32
    return %c0_i32, %c0_i32_0 : i32, i32
  }
  func.func @transform_6(%arg0: i32) -> (i32, i32) {
    %c0_i32 = arith.constant 0 : i32
    %c0_i32_0 = arith.constant 0 : i32
    return %arg0, %c0_i32 : i32, i32
  }
}

</mosaic_0001>

<llo_original>
// kernel: tpu_custom_call.1
$region0: #{tpu_custom_call.1}
  #allocation0 [shape = 'u32[]', space=smem, size = 0x4, offset = 0x4, fixed_abs, tag = 'smem constant byte address 0x4 - core index']
  #allocation1 [shape = 'u32[144,128]{1,0:T(1,128)}', space=vmem, size = 0x12000, scoped, tag = 'internal scratch']
  %s0 = inlined_call_operand.vmem [shape: f32[2,5,16], index: 0, kind: input, shape index: {}]
  %s1 = inlined_call_operand.vmem [shape: f32[16,64], index: 1, kind: input, shape index: {}]
  %s2 = inlined_call_operand.vmem [shape: f32[64,64], index: 2, kind: input, shape index: {}]
  %s3 = inlined_call_operand.vmem [shape: f32[1,64], index: 3, kind: input, shape index: {}]
  %s4 = inlined_call_operand.vmem [shape: f32[320,10], index: 4, kind: input, shape index: {}]
  %s5 = inlined_call_operand.vmem [shape: f32[1,10], index: 5, kind: input, shape index: {}]
  %s6 = inlined_call_operand.hbm [shape: f32[2,10], index: 6, kind: output, shape index: {}]
  %s7 = sld [smem:[#allocation0]]
  $region34: #{tpu_custom_call.1} parent=0
    _
  %s9 = ssub.s32 1, %s7
  %s10 = scalar_select 0, %s9, %s7
  $region1: #{tpu_custom_call.1} parent=0
    #allocation2 [shape = 'u8[1024]{0}', space=vmem, size = 0x400, scoped, tag = 'output window, operand 0, single buffered']
    #allocation3 [shape = 's32[1]{0}', space=sflag, size = 0x4, scoped, tag = 'scoped memory for tpu_custom_call.1']
    %11 = vsyncpa [#allocation3], 0
    // Predicated region
    $region2: #{tpu_custom_call.1} parent=1 // pred_check
      _
    $region3: #{tpu_custom_call.1} parent=1 // pred_check_branch
      %13 = sbr.rel (0) target = $region5
    $region4: #{tpu_custom_call.1} parent=1 // pred_region
      _
    $region5: #{tpu_custom_call.1} parent=1 // pred_fallthru
      _
    // Predicated region
    $region6: #{tpu_custom_call.1} parent=1 // pred_check
      _
    $region7: #{tpu_custom_call.1} parent=1 // pred_check_branch
      %15 = sbr.rel (0) target = $region9
    $region8: #{tpu_custom_call.1} parent=1 // pred_region
      _
    $region9: #{tpu_custom_call.1} parent=1 // pred_fallthru
      _
    // Predicated region
    $region10: #{tpu_custom_call.1} parent=1 // pred_check
      _
    $region11: #{tpu_custom_call.1} parent=1 // pred_check_branch
      %17 = sbr.rel (0) target = $region13
    $region12: #{tpu_custom_call.1} parent=1 // pred_region
      _
    $region13: #{tpu_custom_call.1} parent=1 // pred_fallthru
      _
    // Predicated region
    $region14: #{tpu_custom_call.1} parent=1 // pred_check
      _
    $region15: #{tpu_custom_call.1} parent=1 // pred_check_branch
      %19 = sbr.rel (0) target = $region17
    $region16: #{tpu_custom_call.1} parent=1 // pred_region
      _
    $region17: #{tpu_custom_call.1} parent=1 // pred_fallthru
      _
    // Predicated region
    $region18: #{tpu_custom_call.1} parent=1 // pred_check
      _
    $region19: #{tpu_custom_call.1} parent=1 // pred_check_branch
      %21 = sbr.rel (0) target = $region21
    $region20: #{tpu_custom_call.1} parent=1 // pred_region
      _
    $region21: #{tpu_custom_call.1} parent=1 // pred_fallthru
      _
    // Predicated region
    $region22: #{tpu_custom_call.1} parent=1 // pred_check
      _
    $region23: #{tpu_custom_call.1} parent=1 // pred_check_branch
      %23 = sbr.rel (0) target = $region25
    $region24: #{tpu_custom_call.1} parent=1 // pred_region
      _
    $region25: #{tpu_custom_call.1} parent=1 // pred_fallthru
      _
    %v24 = vld [vmem:[%s2] sm:$0xff]
    %v25 = vld [vmem:[%s2 + $0x8] sm:$0xff]
    %v26 = vld [vmem:[%s2 + $0x10] sm:$0xff]
    %v27 = vld [vmem:[%s2 + $0x18] sm:$0xff]
    %v28 = vld [vmem:[%s2 + $0x20] sm:$0xff]
    %v29 = vld [vmem:[%s2 + $0x28] sm:$0xff]
    %v30 = vld [vmem:[%s2 + $0x30] sm:$0xff]
    %v31 = vld [vmem:[%s2 + $0x38] sm:$0xff]
    %v32 = vld [vmem:[%s4] sm:$0xff]
    %v33 = vld [vmem:[%s4 + $0x8] sm:$0xff]
    %v34 = vld [vmem:[%s4 + $0x10] sm:$0xff]
    %v35 = vld [vmem:[%s4 + $0x18] sm:$0xff]
    %v36 = vld [vmem:[%s4 + $0x20] sm:$0xff]
    %v37 = vld [vmem:[%s4 + $0x28] sm:$0xff]
    %v38 = vld [vmem:[%s4 + $0x30] sm:$0xff]
    %v39 = vld [vmem:[%s4 + $0x38] sm:$0xff]
    %v40 = vld [vmem:[%s4 + $0x40] sm:$0xff]
    %v41 = vld [vmem:[%s4 + $0x48] sm:$0xff]
    %v42 = vld [vmem:[%s4 + $0x50] sm:$0xff]
    %v43 = vld [vmem:[%s4 + $0x58] sm:$0xff]
    %v44 = vld [vmem:[%s4 + $0x60] sm:$0xff]
    %v45 = vld [vmem:[%s4 + $0x68] sm:$0xff]
    %v46 = vld [vmem:[%s4 + $0x70] sm:$0xff]
    %v47 = vld [vmem:[%s4 + $0x78] sm:$0xff]
    %v48 = vld [vmem:[%s4 + $0x80] sm:$0xff]
    %v49 = vld [vmem:[%s4 + $0x88] sm:$0xff]
    %v50 = vld [vmem:[%s4 + $0x90] sm:$0xff]
    %v51 = vld [vmem:[%s4 + $0x98] sm:$0xff]
    %v52 = vld [vmem:[%s4 + $0xa0] sm:$0xff]
    %v53 = vld [vmem:[%s4 + $0xa8] sm:$0xff]
    %v54 = vld [vmem:[%s4 + $0xb0] sm:$0xff]
    %v55 = vld [vmem:[%s4 + $0xb8] sm:$0xff]
    %v56 = vld [vmem:[%s4 + $0xc0] sm:$0xff]
    %v57 = vld [vmem:[%s4 + $0xc8] sm:$0xff]
    %v58 = vld [vmem:[%s4 + $0xd0] sm:$0xff]
    %v59 = vld [vmem:[%s4 + $0xd8] sm:$0xff]
    %v60 = vld [vmem:[%s4 + $0xe0] sm:$0xff]
    %v61 = vld [vmem:[%s4 + $0xe8] sm:$0xff]
    %v62 = vld [vmem:[%s4 + $0xf0] sm:$0xff]
    %v63 = vld [vmem:[%s4 + $0xf8] sm:$0xff]
    %v64 = vld [vmem:[%s4 + $0x100] sm:$0xff]
    %v65 = vld [vmem:[%s4 + $0x108] sm:$0xff]
    %v66 = vld [vmem:[%s4 + $0x110] sm:$0xff]
    %v67 = vld [vmem:[%s4 + $0x118] sm:$0xff]
    %v68 = vld [vmem:[%s4 + $0x120] sm:$0xff]
    %v69 = vld [vmem:[%s4 + $0x128] sm:$0xff]
    %v70 = vld [vmem:[%s4 + $0x130] sm:$0xff]
    %v71 = vld [vmem:[%s4 + $0x138] sm:$0xff]
    %v72 = vld [vmem:[%s3] sm:$0x1]
    %v73 = vld [vmem:[%s0] sm:$0x1f]
    %v74 = vld [vmem:[%s0 + $0x8] sm:$0x1f]
    %v77 = vcombine.high %v73, %v73
    %v79 = vunpack.c.l.s4 1966171168
    %v80 = vunpack.c.0.s8 %v79
    %v81 = vlaneseq
    %v82 = vshrl.u32 %v81, 7
    %v83 = vsub.s32 %v80, %v82
    %v84 = vrot.slane %v73, %v83
    %v86 = vunpack.c.l.s4 1966171168
    %v87 = vunpack.c.0.s8 %v86
    %v88 = vlaneseq
    %v89 = vshrl.u32 %v88, 7
    %v90 = vsub.s32 %v87, %v89
    %v91 = vrot.slane %v77, %v90
    %v92 = vcombine.high %v84, %v84
    %v94 = vunpack.c.l.s4 1966171168
    %v95 = vunpack.c.0.s8 %v94
    %v96 = vlaneseq
    %v97 = vshrl.u32 %v96, 7
    %v98 = vsub.s32 %v95, %v97
    %v99 = vrot.slane %v84, %v98
    %v101 = vunpack.c.l.s4 1966171168
    %v102 = vunpack.c.0.s8 %v101
    %v103 = vlaneseq
    %v104 = vshrl.u32 %v103, 7
    %v105 = vsub.s32 %v102, %v104
    %v106 = vrot.slane %v91, %v105
    %v108 = vunpack.c.l.s4 1966171168
    %v109 = vunpack.c.0.s8 %v108
    %v110 = vlaneseq
    %v111 = vshrl.u32 %v110, 7
    %v112 = vsub.s32 %v109, %v111
    %v113 = vrot.slane %v92, %v112
    %v114 = vcombine.high %v99, %v99
    %v115 = vcombine.high %v113, %v113
    %v116 = vcombine.high %v74, %v74
    %v118 = vunpack.c.l.s4 1966171168
    %v119 = vunpack.c.0.s8 %v118
    %v120 = vlaneseq
    %v121 = vshrl.u32 %v120, 7
    %v122 = vsub.s32 %v119, %v121
    %v123 = vrot.slane %v74, %v122
    %v125 = vunpack.c.l.s4 1966171168
    %v126 = vunpack.c.0.s8 %v125
    %v127 = vlaneseq
    %v128 = vshrl.u32 %v127, 7
    %v129 = vsub.s32 %v126, %v128
    %v130 = vrot.slane %v116, %v129
    %v131 = vcombine.high %v123, %v123
    %v133 = vunpack.c.l.s4 1966171168
    %v134 = vunpack.c.0.s8 %v133
    %v135 = vlaneseq
    %v136 = vshrl.u32 %v135, 7
    %v137 = vsub.s32 %v134, %v136
    %v138 = vrot.slane %v123, %v137
    %v140 = vunpack.c.l.s4 1966171168
    %v141 = vunpack.c.0.s8 %v140
    %v142 = vlaneseq
    %v143 = vshrl.u32 %v142, 7
    %v144 = vsub.s32 %v141, %v143
    %v145 = vrot.slane %v130, %v144
    %v147 = vunpack.c.l.s4 1966171168
    %v148 = vunpack.c.0.s8 %v147
    %v149 = vlaneseq
    %v150 = vshrl.u32 %v149, 7
    %v151 = vsub.s32 %v148, %v150
    %v152 = vrot.slane %v131, %v151
    %v153 = vcombine.high %v138, %v138
    %v154 = vcombine.high %v152, %v152
    %v155 = vld [vmem:[%s1] sm:$0xff]
    %v156 = vld [vmem:[%s1 + $0x8] sm:$0xff]
    %v158 = vlaneseq
    %v159 = vshrl.u32 %v158, 7
    %v160 = vsub.s32 0, %v159
    %v161 = vrot.slane %v72, %v160
    %v163 = vcombine.low %v99, %v113
    %v164 = vcombine.low %v114, %v115
    %v165 = vcombine.low %v106, %v138
    %v166 = vcombine.low %v152, %v153
    %v168 = vunpack.c.l.s4 1966171168
    %v169 = vunpack.c.0.s8 %v168
    %v170 = vlaneseq
    %v171 = vshrl.u32 %v170, 7
    %v172 = vsub.s32 %v169, %v171
    %v173 = vrot.slane %v163, %v172
    %v175 = vunpack.c.l.s4 1966171168
    %v176 = vunpack.c.0.s8 %v175
    %v177 = vlaneseq
    %v178 = vshrl.u32 %v177, 7
    %v179 = vsub.s32 %v176, %v178
    %v180 = vrot.slane %v164, %v179
    %v182 = vunpack.c.l.s4 1966171168
    %v183 = vunpack.c.0.s8 %v182
    %v184 = vlaneseq
    %v185 = vshrl.u32 %v184, 7
    %v186 = vsub.s32 %v183, %v185
    %v187 = vrot.slane %v165, %v186
    %v189 = vunpack.c.l.s4 1966171168
    %v190 = vunpack.c.0.s8 %v189
    %v191 = vlaneseq
    %v192 = vshrl.u32 %v191, 7
    %v193 = vsub.s32 %v190, %v192
    %v194 = vrot.slane %v166, %v193
    %v195 = vcombine.low %v173, %v180
    %v196 = vcombine.low %v187, %v194
    %v198 = vunpack.c.l.s4 1966171168
    %v199 = vunpack.c.0.s8 %v198
    %v200 = vlaneseq
    %v201 = vshrl.u32 %v200, 7
    %v202 = vsub.s32 %v199, %v201
    %v203 = vrot.slane %v195, %v202
    %v205 = vunpack.c.l.s4 1966171168
    %v206 = vunpack.c.0.s8 %v205
    %v207 = vlaneseq
    %v208 = vshrl.u32 %v207, 7
    %v209 = vsub.s32 %v206, %v208
    %v210 = vrot.slane %v196, %v209
    %v211 = vcombine.low %v203, %v210
    %v212 = vcombine.low %v154, %v145
    %v214 = vunpack.c.l.s4 1966171168
    %v215 = vunpack.c.0.s8 %v214
    %v216 = vlaneseq
    %v217 = vshrl.u32 %v216, 7
    %v218 = vsub.s32 %v215, %v217
    %v219 = vrot.slane %v212, %v218
    %v221 = vunpack.c.l.s4 1966171168
    %v222 = vunpack.c.0.s8 %v221
    %v223 = vlaneseq
    %v224 = vshrl.u32 %v223, 7
    %v225 = vsub.s32 %v222, %v224
    %v226 = vrot.slane %v219, %v225
    %vm227 = vcmask 130048
    %v228 = vsel %vm227, %v211, 0
    %v230 = vsel %vm227, %v226, 0
    %232 = vmatprep.subr.mxu0 0.0
    %233 = vmatpush1.msra.mxu0 %v155
    %234 = vmatprep.subr.mxu0 0.0
    %235 = vmatpush1.msra.mxu0 %v156
    %236 = vmatprep.subr.mxu0 0.0
    %237 = vmatpush1.msra.mxu0 0.0
    %238 = vmatprep.subr.mxu0 0.0
    %239 = vmatpush1.msra.mxu0 0.0
    %240 = vmatprep.subr.mxu0 0.0
    %241 = vmatpush1.msra.mxu0 0.0
    %242 = vmatprep.subr.mxu0 0.0
    %243 = vmatpush1.msra.mxu0 0.0
    %244 = vmatprep.subr.mxu0 0.0
    %245 = vmatpush1.msra.mxu0 0.0
    %246 = vmatprep.subr.mxu0 0.0
    %247 = vmatpush1.msra.mxu0 0.0
    %248 = vmatprep.subr.mxu0 0.0
    %249 = vmatpush1.msra.mxu0 0.0
    %250 = vmatprep.subr.mxu0 0.0
    %251 = vmatpush1.msra.mxu0 0.0
    %252 = vmatprep.subr.mxu0 0.0
    %253 = vmatpush1.msra.mxu0 0.0
    %254 = vmatprep.subr.mxu0 0.0
    %255 = vmatpush1.msra.mxu0 0.0
    %256 = vmatprep.subr.mxu0 0.0
    %257 = vmatpush1.msra.mxu0 0.0
    %258 = vmatprep.subr.mxu0 0.0
    %259 = vmatpush1.msra.mxu0 0.0
    %260 = vmatprep.subr.mxu0 0.0
    %261 = vmatpush1.msra.mxu0 0.0
    %262 = vmatprep.subr.mxu0 0.0
    %263 = vmatpush1.msra.mxu0 0.0
    %264 = vmatprep.subr.mxu0 0.0
    %265 = vmatpush1.msra.mxu0 0.0
    %266 = vmatprep.subr.mxu0 0.0
    %267 = vmatpush1.msra.mxu0 0.0
    %268 = vmatprep.subr.mxu0 0.0
    %269 = vmatpush1.msra.mxu0 0.0
    %270 = vmatprep.subr.mxu0 0.0
    %271 = vmatpush1.msra.mxu0 0.0
    %272 = vmatprep.subr.mxu0 0.0
    %273 = vmatpush1.msra.mxu0 0.0
    %274 = vmatprep.subr.mxu0 0.0
    %275 = vmatpush1.msra.mxu0 0.0
    %276 = vmatprep.subr.mxu0 0.0
    %277 = vmatpush1.msra.mxu0 0.0
    %278 = vmatprep.subr.mxu0 0.0
    %279 = vmatpush1.msra.mxu0 0.0
    %280 = vmatprep.subr.mxu0 0.0
    %281 = vmatpush1.msra.mxu0 0.0
    %282 = vmatprep.subr.mxu0 0.0
    %283 = vmatpush1.msra.mxu0 0.0
    %284 = vmatprep.subr.mxu0 0.0
    %285 = vmatpush1.msra.mxu0 0.0
    %286 = vmatprep.subr.mxu0 0.0
    %287 = vmatpush1.msra.mxu0 0.0
    %288 = vmatprep.subr.mxu0 0.0
    %289 = vmatpush1.msra.mxu0 0.0
    %290 = vmatprep.subr.mxu0 0.0
    %291 = vmatpush1.msra.mxu0 0.0
    %292 = vmatprep.subr.mxu0 0.0
    %293 = vmatpush1.msra.mxu0 0.0
    %294 = vmatprep.subr.mxu0 0.0
    %295 = vmatpush1.msra.mxu0 0.0
    %296 = vmatprep.mubr.f32.mxu0 0.0
    %297 = vmatmul.mubr.f32.gmra.mrb[0].mxu0 %v228
    %v298 = vpop.f32.mrb[0].mxu0
    %v299 = vadd.f32 %v161, %v298
    %v300 = vpop.f32.mrb[0].mxu0
    %301 = vmatprep.mubr.f32.mxu0 0.0
    %302 = vmatmul.mubr.f32.gmra.mrb[0].mxu0 %v230
    %v303 = vpop.f32.mrb[0].mxu0
    %v304 = vadd.f32 %v161, %v303
    %v305 = vpop.f32.mrb[0].mxu0
    %306 = vdwg.mxu0
    %v309 = vcombine.high %v299, %v299
    %v311 = vunpack.c.l.s4 1966171168
    %v312 = vunpack.c.0.s8 %v311
    %v313 = vlaneseq
    %v314 = vshrl.u32 %v313, 7
    %v315 = vsub.s32 %v312, %v314
    %v316 = vrot.slane %v299, %v315
    %v318 = vunpack.c.l.s4 1966171168
    %v319 = vunpack.c.0.s8 %v318
    %v320 = vlaneseq
    %v321 = vshrl.u32 %v320, 7
    %v322 = vsub.s32 %v319, %v321
    %v323 = vrot.slane %v309, %v322
    %v324 = vcombine.high %v316, %v316
    %v325 = vcombine.high %v323, %v323
    %v327 = vunpack.c.l.s4 1966171168
    %v328 = vunpack.c.0.s8 %v327
    %v329 = vlaneseq
    %v330 = vshrl.u32 %v329, 7
    %v331 = vsub.s32 %v328, %v330
    %v332 = vrot.slane %v316, %v331
    %v334 = vunpack.c.l.s4 1966171168
    %v335 = vunpack.c.0.s8 %v334
    %v336 = vlaneseq
    %v337 = vshrl.u32 %v336, 7
    %v338 = vsub.s32 %v335, %v337
    %v339 = vrot.slane %v323, %v338
    %v341 = vunpack.c.l.s4 1966171168
    %v342 = vunpack.c.0.s8 %v341
    %v343 = vlaneseq
    %v344 = vshrl.u32 %v343, 7
    %v345 = vsub.s32 %v342, %v344
    %v346 = vrot.slane %v324, %v345
    %v348 = vunpack.c.l.s4 1966171168
    %v349 = vunpack.c.0.s8 %v348
    %v350 = vlaneseq
    %v351 = vshrl.u32 %v350, 7
    %v352 = vsub.s32 %v349, %v351
    %v353 = vrot.slane %v325, %v352
    %v354 = vcombine.high %v332, %v332
    %v355 = vcombine.high %v339, %v339
    %v356 = vcombine.high %v346, %v346
    %v357 = vcombine.high %v353, %v353
    %v359 = vunpack.c.l.s4 1966171168
    %v360 = vunpack.c.0.s8 %v359
    %v361 = vlaneseq
    %v362 = vshrl.u32 %v361, 7
    %v363 = vsub.s32 %v360, %v362
    %v364 = vrot.slane %v304, %v363
    %v365 = vcombine.high %v364, %v364
    %v367 = vunpack.c.l.s4 1966171168
    %v368 = vunpack.c.0.s8 %v367
    %v369 = vlaneseq
    %v370 = vshrl.u32 %v369, 7
    %v371 = vsub.s32 %v368, %v370
    %v372 = vrot.slane %v364, %v371
    %v374 = vunpack.c.l.s4 1966171168
    %v375 = vunpack.c.0.s8 %v374
    %v376 = vlaneseq
    %v377 = vshrl.u32 %v376, 7
    %v378 = vsub.s32 %v375, %v377
    %v379 = vrot.slane %v365, %v378
    %vm390 = vcmask 523264
    %v392 = vsel %vm390, 0.0, 0
    %394 = vmatprep.subr.mxu0 0.0
    %395 = vmatpush1.msra.mxu0 %v24
    %396 = vmatprep.subr.mxu0 0.0
    %397 = vmatpush1.msra.mxu0 %v25
    %398 = vmatprep.subr.mxu0 0.0
    %399 = vmatpush1.msra.mxu0 %v26
    %400 = vmatprep.subr.mxu0 0.0
    %401 = vmatpush1.msra.mxu0 %v27
    %402 = vmatprep.subr.mxu0 0.0
    %403 = vmatpush1.msra.mxu0 %v28
    %404 = vmatprep.subr.mxu0 0.0
    %405 = vmatpush1.msra.mxu0 %v29
    %406 = vmatprep.subr.mxu0 0.0
    %407 = vmatpush1.msra.mxu0 %v30
    %408 = vmatprep.subr.mxu0 0.0
    %409 = vmatpush1.msra.mxu0 %v31
    %410 = vmatprep.subr.mxu0 0.0
    %411 = vmatpush1.msra.mxu0 0.0
    %412 = vmatprep.subr.mxu0 0.0
    %413 = vmatpush1.msra.mxu0 0.0
    %414 = vmatprep.subr.mxu0 0.0
    %415 = vmatpush1.msra.mxu0 0.0
    %416 = vmatprep.subr.mxu0 0.0
    %417 = vmatpush1.msra.mxu0 0.0
    %418 = vmatprep.subr.mxu0 0.0
    %419 = vmatpush1.msra.mxu0 0.0
    %420 = vmatprep.subr.mxu0 0.0
    %421 = vmatpush1.msra.mxu0 0.0
    %422 = vmatprep.subr.mxu0 0.0
    %423 = vmatpush1.msra.mxu0 0.0
    %424 = vmatprep.subr.mxu0 0.0
    %425 = vmatpush1.msra.mxu0 0.0
    %426 = vmatprep.subr.mxu0 0.0
    %427 = vmatpush1.msra.mxu0 0.0
    %428 = vmatprep.subr.mxu0 0.0
    %429 = vmatpush1.msra.mxu0 0.0
    %430 = vmatprep.subr.mxu0 0.0
    %431 = vmatpush1.msra.mxu0 0.0
    %432 = vmatprep.subr.mxu0 0.0
    %433 = vmatpush1.msra.mxu0 0.0
    %434 = vmatprep.subr.mxu0 0.0
    %435 = vmatpush1.msra.mxu0 0.0
    %436 = vmatprep.subr.mxu0 0.0
    %437 = vmatpush1.msra.mxu0 0.0
    %438 = vmatprep.subr.mxu0 0.0
    %439 = vmatpush1.msra.mxu0 0.0
    %440 = vmatprep.subr.mxu0 0.0
    %441 = vmatpush1.msra.mxu0 0.0
    %442 = vmatprep.subr.mxu0 0.0
    %443 = vmatpush1.msra.mxu0 0.0
    %444 = vmatprep.subr.mxu0 0.0
    %445 = vmatpush1.msra.mxu0 0.0
    %446 = vmatprep.subr.mxu0 0.0
    %447 = vmatpush1.msra.mxu0 0.0
    %448 = vmatprep.subr.mxu0 0.0
    %449 = vmatpush1.msra.mxu0 0.0
    %450 = vmatprep.subr.mxu0 0.0
    %451 = vmatpush1.msra.mxu0 0.0
    %452 = vmatprep.subr.mxu0 0.0
    %453 = vmatpush1.msra.mxu0 0.0
    %454 = vmatprep.subr.mxu0 0.0
    %455 = vmatpush1.msra.mxu0 0.0
    %456 = vmatprep.subr.mxu0 0.0
    %457 = vmatpush1.msra.mxu0 0.0
    %458 = vmatprep.mubr.f32.mxu0 0.0
    %459 = vmatmul.mubr.f32.gmra.mrb[0].mxu0 %v392
    %v460 = vpop.f32.mrb[0].mxu0
    %v461 = vadd.f32 0.0, %v460
    %v462 = vpop.f32.mrb[0].mxu0
    %463 = vdwg.mxu0
    %v466 = vunpack.c.l.s4 1966171168
    %v467 = vunpack.c.0.s8 %v466
    %v468 = vlaneseq
    %v469 = vshrl.u32 %v468, 7
    %v470 = vsub.s32 %v467, %v469
    %v471 = vrot.slane %v461, %v470
    %v472 = vcombine.high %v471, %v471
    %v474 = vunpack.c.l.s4 1966171168
    %v475 = vunpack.c.0.s8 %v474
    %v476 = vlaneseq
    %v477 = vshrl.u32 %v476, 7
    %v478 = vsub.s32 %v475, %v477
    %v479 = vrot.slane %v471, %v478
    %v481 = vunpack.c.l.s4 1966171168
    %v482 = vunpack.c.0.s8 %v481
    %v483 = vlaneseq
    %v484 = vshrl.u32 %v483, 7
    %v485 = vsub.s32 %v482, %v484
    %v486 = vrot.slane %v472, %v485
    %v489 = vadd.f32 %v332, %v479
    %v490 = vadd.f32 %v353, %v486
    %v491 = vtanh.pop %v489
    %v492 = vtanh.pop %v490
    %v493 = vxor.u32 %v491, 2147483648
    %v494 = vxor.u32 %v492, 2147483648
    %v495 = vmul.f32 %v493, 1.442695
    %v496 = vpow.pop %v495
    %v497 = vmul.f32 %v494, 1.442695
    %v498 = vpow.pop %v497
    %v499 = vadd.f32 %v496, 1.0
    %v500 = vadd.f32 %v498, 1.0
    %v501 = vrcp.pop %v499
    %v502 = vmul.f32 1.0, %v501
    %v503 = vrcp.pop %v500
    %v504 = vmul.f32 1.0, %v503
    %v507 = vcombine.low %v491, %v492
    %v509 = vunpack.c.l.s4 1966171168
    %v510 = vunpack.c.0.s8 %v509
    %v511 = vlaneseq
    %v512 = vshrl.u32 %v511, 7
    %v513 = vsub.s32 %v510, %v512
    %v514 = vrot.slane %v507, %v513
    %v516 = vunpack.c.l.s4 1966171168
    %v517 = vunpack.c.0.s8 %v516
    %v518 = vlaneseq
    %v519 = vshrl.u32 %v518, 7
    %v520 = vsub.s32 %v517, %v519
    %v521 = vrot.slane %v514, %v520
    %v522 = vsel %vm390, %v521, 0
    %524 = vmatprep.subr.mxu0 0.0
    %525 = vmatpush1.msra.mxu0 %v24
    %526 = vmatprep.subr.mxu0 0.0
    %527 = vmatpush1.msra.mxu0 %v25
    %528 = vmatprep.subr.mxu0 0.0
    %529 = vmatpush1.msra.mxu0 %v26
    %530 = vmatprep.subr.mxu0 0.0
    %531 = vmatpush1.msra.mxu0 %v27
    %532 = vmatprep.subr.mxu0 0.0
    %533 = vmatpush1.msra.mxu0 %v28
    %534 = vmatprep.subr.mxu0 0.0
    %535 = vmatpush1.msra.mxu0 %v29
    %536 = vmatprep.subr.mxu0 0.0
    %537 = vmatpush1.msra.mxu0 %v30
    %538 = vmatprep.subr.mxu0 0.0
    %539 = vmatpush1.msra.mxu0 %v31
    %540 = vmatprep.subr.mxu0 0.0
    %541 = vmatpush1.msra.mxu0 0.0
    %542 = vmatprep.subr.mxu0 0.0
    %543 = vmatpush1.msra.mxu0 0.0
    %544 = vmatprep.subr.mxu0 0.0
    %545 = vmatpush1.msra.mxu0 0.0
    %546 = vmatprep.subr.mxu0 0.0
    %547 = vmatpush1.msra.mxu0 0.0
    %548 = vmatprep.subr.mxu0 0.0
    %549 = vmatpush1.msra.mxu0 0.0
    %550 = vmatprep.subr.mxu0 0.0
    %551 = vmatpush1.msra.mxu0 0.0
    %552 = vmatprep.subr.mxu0 0.0
    %553 = vmatpush1.msra.mxu0 0.0
    %554 = vmatprep.subr.mxu0 0.0
    %555 = vmatpush1.msra.mxu0 0.0
    %556 = vmatprep.subr.mxu0 0.0
    %557 = vmatpush1.msra.mxu0 0.0
    %558 = vmatprep.subr.mxu0 0.0
    %559 = vmatpush1.msra.mxu0 0.0
    %560 = vmatprep.subr.mxu0 0.0
    %561 = vmatpush1.msra.mxu0 0.0
    %562 = vmatprep.subr.mxu0 0.0
    %563 = vmatpush1.msra.mxu0 0.0
    %564 = vmatprep.subr.mxu0 0.0
    %565 = vmatpush1.msra.mxu0 0.0
    %566 = vmatprep.subr.mxu0 0.0
    %567 = vmatpush1.msra.mxu0 0.0
    %568 = vmatprep.subr.mxu0 0.0
    %569 = vmatpush1.msra.mxu0 0.0
    %570 = vmatprep.subr.mxu0 0.0
    %571 = vmatpush1.msra.mxu0 0.0
    %572 = vmatprep.subr.mxu0 0.0
    %573 = vmatpush1.msra.mxu0 0.0
    %574 = vmatprep.subr.mxu0 0.0
    %575 = vmatpush1.msra.mxu0 0.0
    %576 = vmatprep.subr.mxu0 0.0
    %577 = vmatpush1.msra.mxu0 0.0
    %578 = vmatprep.subr.mxu0 0.0
    %579 = vmatpush1.msra.mxu0 0.0
    %580 = vmatprep.subr.mxu0 0.0
    %581 = vmatpush1.msra.mxu0 0.0
    %582 = vmatprep.subr.mxu0 0.0
    %583 = vmatpush1.msra.mxu0 0.0
    %584 = vmatprep.subr.mxu0 0.0
    %585 = vmatpush1.msra.mxu0 0.0
    %586 = vmatprep.subr.mxu0 0.0
    %587 = vmatpush1.msra.mxu0 0.0
    %588 = vmatprep.mubr.f32.mxu0 0.0
    %589 = vmatmul.mubr.f32.gmra.mrb[0].mxu0 %v522
    %v590 = vpop.f32.mrb[0].mxu0
    %v591 = vadd.f32 0.0, %v590
    %v592 = vpop.f32.mrb[0].mxu0
    %593 = vdwg.mxu0
    %v596 = vunpack.c.l.s4 1966171168
    %v597 = vunpack.c.0.s8 %v596
    %v598 = vlaneseq
    %v599 = vshrl.u32 %v598, 7
    %v600 = vsub.s32 %v597, %v599
    %v601 = vrot.slane %v591, %v600
    %v602 = vcombine.high %v601, %v601
    %v604 = vunpack.c.l.s4 1966171168
    %v605 = vunpack.c.0.s8 %v604
    %v606 = vlaneseq
    %v607 = vshrl.u32 %v606, 7
    %v608 = vsub.s32 %v605, %v607
    %v609 = vrot.slane %v601, %v608
    %v611 = vunpack.c.l.s4 1966171168
    %v612 = vunpack.c.0.s8 %v611
    %v613 = vlaneseq
    %v614 = vshrl.u32 %v613, 7
    %v615 = vsub.s32 %v612, %v614
    %v616 = vrot.slane %v602, %v615
    %v619 = vadd.f32 %v346, %v609
    %v620 = vadd.f32 %v355, %v616
    %v621 = vtanh.pop %v619
    %v622 = vtanh.pop %v620
    %v623 = vxor.u32 %v621, 2147483648
    %v624 = vxor.u32 %v622, 2147483648
    %v625 = vmul.f32 %v623, 1.442695
    %v626 = vpow.pop %v625
    %v627 = vmul.f32 %v624, 1.442695
    %v628 = vpow.pop %v627
    %v629 = vadd.f32 %v626, 1.0
    %v630 = vadd.f32 %v628, 1.0
    %v631 = vrcp.pop %v629
    %v632 = vmul.f32 1.0, %v631
    %v633 = vrcp.pop %v630
    %v634 = vmul.f32 1.0, %v633
    %v637 = vcombine.low %v621, %v622
    %v639 = vunpack.c.l.s4 1966171168
    %v640 = vunpack.c.0.s8 %v639
    %v641 = vlaneseq
    %v642 = vshrl.u32 %v641, 7
    %v643 = vsub.s32 %v640, %v642
    %v644 = vrot.slane %v637, %v643
    %v646 = vunpack.c.l.s4 1966171168
    %v647 = vunpack.c.0.s8 %v646
    %v648 = vlaneseq
    %v649 = vshrl.u32 %v648, 7
    %v650 = vsub.s32 %v647, %v649
    %v651 = vrot.slane %v644, %v650
    %v652 = vsel %vm390, %v651, 0
    %654 = vmatprep.subr.mxu0 0.0
    %655 = vmatpush1.msra.mxu0 %v24
    %656 = vmatprep.subr.mxu0 0.0
    %657 = vmatpush1.msra.mxu0 %v25
    %658 = vmatprep.subr.mxu0 0.0
    %659 = vmatpush1.msra.mxu0 %v26
    %660 = vmatprep.subr.mxu0 0.0
    %661 = vmatpush1.msra.mxu0 %v27
    %662 = vmatprep.subr.mxu0 0.0
    %663 = vmatpush1.msra.mxu0 %v28
    %664 = vmatprep.subr.mxu0 0.0
    %665 = vmatpush1.msra.mxu0 %v29
    %666 = vmatprep.subr.mxu0 0.0
    %667 = vmatpush1.msra.mxu0 %v30
    %668 = vmatprep.subr.mxu0 0.0
    %669 = vmatpush1.msra.mxu0 %v31
    %670 = vmatprep.subr.mxu0 0.0
    %671 = vmatpush1.msra.mxu0 0.0
    %672 = vmatprep.subr.mxu0 0.0
    %673 = vmatpush1.msra.mxu0 0.0
    %674 = vmatprep.subr.mxu0 0.0
    %675 = vmatpush1.msra.mxu0 0.0
    %676 = vmatprep.subr.mxu0 0.0
    %677 = vmatpush1.msra.mxu0 0.0
    %678 = vmatprep.subr.mxu0 0.0
    %679 = vmatpush1.msra.mxu0 0.0
    %680 = vmatprep.subr.mxu0 0.0
    %681 = vmatpush1.msra.mxu0 0.0
    %682 = vmatprep.subr.mxu0 0.0
    %683 = vmatpush1.msra.mxu0 0.0
    %684 = vmatprep.subr.mxu0 0.0
    %685 = vmatpush1.msra.mxu0 0.0
    %686 = vmatprep.subr.mxu0 0.0
    %687 = vmatpush1.msra.mxu0 0.0
    %688 = vmatprep.subr.mxu0 0.0
    %689 = vmatpush1.msra.mxu0 0.0
    %690 = vmatprep.subr.mxu0 0.0
    %691 = vmatpush1.msra.mxu0 0.0
    %692 = vmatprep.subr.mxu0 0.0
    %693 = vmatpush1.msra.mxu0 0.0
    %694 = vmatprep.subr.mxu0 0.0
    %695 = vmatpush1.msra.mxu0 0.0
    %696 = vmatprep.subr.mxu0 0.0
    %697 = vmatpush1.msra.mxu0 0.0
    %698 = vmatprep.subr.mxu0 0.0
    %699 = vmatpush1.msra.mxu0 0.0
    %700 = vmatprep.subr.mxu0 0.0
    %701 = vmatpush1.msra.mxu0 0.0
    %702 = vmatprep.subr.mxu0 0.0
    %703 = vmatpush1.msra.mxu0 0.0
    %704 = vmatprep.subr.mxu0 0.0
    %705 = vmatpush1.msra.mxu0 0.0
    %706 = vmatprep.subr.mxu0 0.0
    %707 = vmatpush1.msra.mxu0 0.0
    %708 = vmatprep.subr.mxu0 0.0
    %709 = vmatpush1.msra.mxu0 0.0
    %710 = vmatprep.subr.mxu0 0.0
    %711 = vmatpush1.msra.mxu0 0.0
    %712 = vmatprep.subr.mxu0 0.0
    %713 = vmatpush1.msra.mxu0 0.0
    %714 = vmatprep.subr.mxu0 0.0
    %715 = vmatpush1.msra.mxu0 0.0
    %716 = vmatprep.subr.mxu0 0.0
    %717 = vmatpush1.msra.mxu0 0.0
    %718 = vmatprep.mubr.f32.mxu0 0.0
    %719 = vmatmul.mubr.f32.gmra.mrb[0].mxu0 %v652
    %v720 = vpop.f32.mrb[0].mxu0
    %v721 = vadd.f32 0.0, %v720
    %v722 = vpop.f32.mrb[0].mxu0
    %723 = vdwg.mxu0
    %v726 = vunpack.c.l.s4 1966171168
    %v727 = vunpack.c.0.s8 %v726
    %v728 = vlaneseq
    %v729 = vshrl.u32 %v728, 7
    %v730 = vsub.s32 %v727, %v729
    %v731 = vrot.slane %v721, %v730
    %v732 = vcombine.high %v731, %v731
    %v734 = vunpack.c.l.s4 1966171168
    %v735 = vunpack.c.0.s8 %v734
    %v736 = vlaneseq
    %v737 = vshrl.u32 %v736, 7
    %v738 = vsub.s32 %v735, %v737
    %v739 = vrot.slane %v731, %v738
    %v741 = vunpack.c.l.s4 1966171168
    %v742 = vunpack.c.0.s8 %v741
    %v743 = vlaneseq
    %v744 = vshrl.u32 %v743, 7
    %v745 = vsub.s32 %v742, %v744
    %v746 = vrot.slane %v732, %v745
    %v749 = vadd.f32 %v354, %v739
    %v750 = vadd.f32 %v357, %v746
    %v751 = vtanh.pop %v749
    %v752 = vtanh.pop %v750
    %v753 = vxor.u32 %v751, 2147483648
    %v754 = vxor.u32 %v752, 2147483648
    %v755 = vmul.f32 %v753, 1.442695
    %v756 = vpow.pop %v755
    %v757 = vmul.f32 %v754, 1.442695
    %v758 = vpow.pop %v757
    %v759 = vadd.f32 %v756, 1.0
    %v760 = vadd.f32 %v758, 1.0
    %v761 = vrcp.pop %v759
    %v762 = vmul.f32 1.0, %v761
    %v763 = vrcp.pop %v760
    %v764 = vmul.f32 1.0, %v763
    %v767 = vcombine.low %v751, %v752
    %v769 = vunpack.c.l.s4 1966171168
    %v770 = vunpack.c.0.s8 %v769
    %v771 = vlaneseq
    %v772 = vshrl.u32 %v771, 7
    %v773 = vsub.s32 %v770, %v772
    %v774 = vrot.slane %v767, %v773
    %v776 = vunpack.c.l.s4 1966171168
    %v777 = vunpack.c.0.s8 %v776
    %v778 = vlaneseq
    %v779 = vshrl.u32 %v778, 7
    %v780 = vsub.s32 %v777, %v779
    %v781 = vrot.slane %v774, %v780
    %v782 = vsel %vm390, %v781, 0
    %784 = vmatprep.subr.mxu0 0.0
    %785 = vmatpush1.msra.mxu0 %v24
    %786 = vmatprep.subr.mxu0 0.0
    %787 = vmatpush1.msra.mxu0 %v25
    %788 = vmatprep.subr.mxu0 0.0
    %789 = vmatpush1.msra.mxu0 %v26
    %790 = vmatprep.subr.mxu0 0.0
    %791 = vmatpush1.msra.mxu0 %v27
    %792 = vmatprep.subr.mxu0 0.0
    %793 = vmatpush1.msra.mxu0 %v28
    %794 = vmatprep.subr.mxu0 0.0
    %795 = vmatpush1.msra.mxu0 %v29
    %796 = vmatprep.subr.mxu0 0.0
    %797 = vmatpush1.msra.mxu0 %v30
    %798 = vmatprep.subr.mxu0 0.0
    %799 = vmatpush1.msra.mxu0 %v31
    %800 = vmatprep.subr.mxu0 0.0
    %801 = vmatpush1.msra.mxu0 0.0
    %802 = vmatprep.subr.mxu0 0.0
    %803 = vmatpush1.msra.mxu0 0.0
    %804 = vmatprep.subr.mxu0 0.0
    %805 = vmatpush1.msra.mxu0 0.0
    %806 = vmatprep.subr.mxu0 0.0
    %807 = vmatpush1.msra.mxu0 0.0
    %808 = vmatprep.subr.mxu0 0.0
    %809 = vmatpush1.msra.mxu0 0.0
    %810 = vmatprep.subr.mxu0 0.0
    %811 = vmatpush1.msra.mxu0 0.0
    %812 = vmatprep.subr.mxu0 0.0
    %813 = vmatpush1.msra.mxu0 0.0
    %814 = vmatprep.subr.mxu0 0.0
    %815 = vmatpush1.msra.mxu0 0.0
    %816 = vmatprep.subr.mxu0 0.0
    %817 = vmatpush1.msra.mxu0 0.0
    %818 = vmatprep.subr.mxu0 0.0
    %819 = vmatpush1.msra.mxu0 0.0
    %820 = vmatprep.subr.mxu0 0.0
    %821 = vmatpush1.msra.mxu0 0.0
    %822 = vmatprep.subr.mxu0 0.0
    %823 = vmatpush1.msra.mxu0 0.0
    %824 = vmatprep.subr.mxu0 0.0
    %825 = vmatpush1.msra.mxu0 0.0
    %826 = vmatprep.subr.mxu0 0.0
    %827 = vmatpush1.msra.mxu0 0.0
    %828 = vmatprep.subr.mxu0 0.0
    %829 = vmatpush1.msra.mxu0 0.0
    %830 = vmatprep.subr.mxu0 0.0
    %831 = vmatpush1.msra.mxu0 0.0
    %832 = vmatprep.subr.mxu0 0.0
    %833 = vmatpush1.msra.mxu0 0.0
    %834 = vmatprep.subr.mxu0 0.0
    %835 = vmatpush1.msra.mxu0 0.0
    %836 = vmatprep.subr.mxu0 0.0
    %837 = vmatpush1.msra.mxu0 0.0
    %838 = vmatprep.subr.mxu0 0.0
    %839 = vmatpush1.msra.mxu0 0.0
    %840 = vmatprep.subr.mxu0 0.0
    %841 = vmatpush1.msra.mxu0 0.0
    %842 = vmatprep.subr.mxu0 0.0
    %843 = vmatpush1.msra.mxu0 0.0
    %844 = vmatprep.subr.mxu0 0.0
    %845 = vmatpush1.msra.mxu0 0.0
    %846 = vmatprep.subr.mxu0 0.0
    %847 = vmatpush1.msra.mxu0 0.0
    %848 = vmatprep.mubr.f32.mxu0 0.0
    %849 = vmatmul.mubr.f32.gmra.mrb[0].mxu0 %v782
    %v850 = vpop.f32.mrb[0].mxu0
    %v851 = vadd.f32 0.0, %v850
    %v852 = vpop.f32.mrb[0].mxu0
    %853 = vdwg.mxu0
    %v856 = vunpack.c.l.s4 1966171168
    %v857 = vunpack.c.0.s8 %v856
    %v858 = vlaneseq
    %v859 = vshrl.u32 %v858, 7
    %v860 = vsub.s32 %v857, %v859
    %v861 = vrot.slane %v851, %v860
    %v862 = vcombine.high %v861, %v861
    %v864 = vunpack.c.l.s4 1966171168
    %v865 = vunpack.c.0.s8 %v864
    %v866 = vlaneseq
    %v867 = vshrl.u32 %v866, 7
    %v868 = vsub.s32 %v865, %v867
    %v869 = vrot.slane %v861, %v868
    %v871 = vunpack.c.l.s4 1966171168
    %v872 = vunpack.c.0.s8 %v871
    %v873 = vlaneseq
    %v874 = vshrl.u32 %v873, 7
    %v875 = vsub.s32 %v872, %v874
    %v876 = vrot.slane %v862, %v875
    %v879 = vadd.f32 %v356, %v869
    %v880 = vadd.f32 %v372, %v876
    %v881 = vtanh.pop %v879
    %v882 = vtanh.pop %v880
    %v883 = vxor.u32 %v881, 2147483648
    %v884 = vxor.u32 %v882, 2147483648
    %v885 = vmul.f32 %v883, 1.442695
    %v886 = vpow.pop %v885
    %v887 = vmul.f32 %v884, 1.442695
    %v888 = vpow.pop %v887
    %v889 = vadd.f32 %v886, 1.0
    %v890 = vadd.f32 %v888, 1.0
    %v891 = vrcp.pop %v889
    %v892 = vmul.f32 1.0, %v891
    %v893 = vrcp.pop %v890
    %v894 = vmul.f32 1.0, %v893
    %v897 = vcombine.low %v881, %v882
    %v899 = vunpack.c.l.s4 1966171168
    %v900 = vunpack.c.0.s8 %v899
    %v901 = vlaneseq
    %v902 = vshrl.u32 %v901, 7
    %v903 = vsub.s32 %v900, %v902
    %v904 = vrot.slane %v897, %v903
    %v906 = vunpack.c.l.s4 1966171168
    %v907 = vunpack.c.0.s8 %v906
    %v908 = vlaneseq
    %v909 = vshrl.u32 %v908, 7
    %v910 = vsub.s32 %v907, %v909
    %v911 = vrot.slane %v904, %v910
    %v912 = vsel %vm390, %v911, 0
    %914 = vmatprep.subr.mxu0 0.0
    %915 = vmatpush1.msra.mxu0 %v24
    %916 = vmatprep.subr.mxu0 0.0
    %917 = vmatpush1.msra.mxu0 %v25
    %918 = vmatprep.subr.mxu0 0.0
    %919 = vmatpush1.msra.mxu0 %v26
    %920 = vmatprep.subr.mxu0 0.0
    %921 = vmatpush1.msra.mxu0 %v27
    %922 = vmatprep.subr.mxu0 0.0
    %923 = vmatpush1.msra.mxu0 %v28
    %924 = vmatprep.subr.mxu0 0.0
    %925 = vmatpush1.msra.mxu0 %v29
    %926 = vmatprep.subr.mxu0 0.0
    %927 = vmatpush1.msra.mxu0 %v30
    %928 = vmatprep.subr.mxu0 0.0
    %929 = vmatpush1.msra.mxu0 %v31
    %930 = vmatprep.subr.mxu0 0.0
    %931 = vmatpush1.msra.mxu0 0.0
    %932 = vmatprep.subr.mxu0 0.0
    %933 = vmatpush1.msra.mxu0 0.0
    %934 = vmatprep.subr.mxu0 0.0
    %935 = vmatpush1.msra.mxu0 0.0
    %936 = vmatprep.subr.mxu0 0.0
    %937 = vmatpush1.msra.mxu0 0.0
    %938 = vmatprep.subr.mxu0 0.0
    %939 = vmatpush1.msra.mxu0 0.0
    %940 = vmatprep.subr.mxu0 0.0
    %941 = vmatpush1.msra.mxu0 0.0
    %942 = vmatprep.subr.mxu0 0.0
    %943 = vmatpush1.msra.mxu0 0.0
    %944 = vmatprep.subr.mxu0 0.0
    %945 = vmatpush1.msra.mxu0 0.0
    %946 = vmatprep.subr.mxu0 0.0
    %947 = vmatpush1.msra.mxu0 0.0
    %948 = vmatprep.subr.mxu0 0.0
    %949 = vmatpush1.msra.mxu0 0.0
    %950 = vmatprep.subr.mxu0 0.0
    %951 = vmatpush1.msra.mxu0 0.0
    %952 = vmatprep.subr.mxu0 0.0
    %953 = vmatpush1.msra.mxu0 0.0
    %954 = vmatprep.subr.mxu0 0.0
    %955 = vmatpush1.msra.mxu0 0.0
    %956 = vmatprep.subr.mxu0 0.0
    %957 = vmatpush1.msra.mxu0 0.0
    %958 = vmatprep.subr.mxu0 0.0
    %959 = vmatpush1.msra.mxu0 0.0
    %960 = vmatprep.subr.mxu0 0.0
    %961 = vmatpush1.msra.mxu0 0.0
    %962 = vmatprep.subr.mxu0 0.0
    %963 = vmatpush1.msra.mxu0 0.0
    %964 = vmatprep.subr.mxu0 0.0
    %965 = vmatpush1.msra.mxu0 0.0
    %966 = vmatprep.subr.mxu0 0.0
    %967 = vmatpush1.msra.mxu0 0.0
    %968 = vmatprep.subr.mxu0 0.0
    %969 = vmatpush1.msra.mxu0 0.0
    %970 = vmatprep.subr.mxu0 0.0
    %971 = vmatpush1.msra.mxu0 0.0
    %972 = vmatprep.subr.mxu0 0.0
    %973 = vmatpush1.msra.mxu0 0.0
    %974 = vmatprep.subr.mxu0 0.0
    %975 = vmatpush1.msra.mxu0 0.0
    %976 = vmatprep.subr.mxu0 0.0
    %977 = vmatpush1.msra.mxu0 0.0
    %978 = vmatprep.mubr.f32.mxu0 0.0
    %979 = vmatmul.mubr.f32.gmra.mrb[0].mxu0 %v912
    %v980 = vpop.f32.mrb[0].mxu0
    %v981 = vadd.f32 0.0, %v980
    %v982 = vpop.f32.mrb[0].mxu0
    %983 = vdwg.mxu0
    %v986 = vunpack.c.l.s4 1966171168
    %v987 = vunpack.c.0.s8 %v986
    %v988 = vlaneseq
    %v989 = vshrl.u32 %v988, 7
    %v990 = vsub.s32 %v987, %v989
    %v991 = vrot.slane %v981, %v990
    %v992 = vcombine.high %v991, %v991
    %v994 = vunpack.c.l.s4 1966171168
    %v995 = vunpack.c.0.s8 %v994
    %v996 = vlaneseq
    %v997 = vshrl.u32 %v996, 7
    %v998 = vsub.s32 %v995, %v997
    %v999 = vrot.slane %v991, %v998
    %v1001 = vunpack.c.l.s4 1966171168
    %v1002 = vunpack.c.0.s8 %v1001
    %v1003 = vlaneseq
    %v1004 = vshrl.u32 %v1003, 7
    %v1005 = vsub.s32 %v1002, %v1004
    %v1006 = vrot.slane %v992, %v1005
    %v1009 = vadd.f32 %v339, %v999
    %v1010 = vadd.f32 %v379, %v1006
    %v1011 = vtanh.pop %v1009
    %v1012 = vtanh.pop %v1010
    %v1013 = vxor.u32 %v1011, 2147483648
    %v1014 = vxor.u32 %v1012, 2147483648
    %v1015 = vmul.f32 %v1013, 1.442695
    %v1016 = vpow.pop %v1015
    %v1017 = vmul.f32 %v1014, 1.442695
    %v1018 = vpow.pop %v1017
    %v1019 = vadd.f32 %v1016, 1.0
    %v1020 = vadd.f32 %v1018, 1.0
    %v1021 = vrcp.pop %v1019
    %v1022 = vmul.f32 1.0, %v1021
    %v1023 = vrcp.pop %v1020
    %v1024 = vmul.f32 1.0, %v1023
    %v1027 = vcombine.low %v502, %v504
    %v1029 = vunpack.c.l.s4 1966171168
    %v1030 = vunpack.c.0.s8 %v1029
    %v1031 = vlaneseq
    %v1032 = vshrl.u32 %v1031, 7
    %v1033 = vsub.s32 %v1030, %v1032
    %v1034 = vrot.slane %v1027, %v1033
    %v1036 = vunpack.c.l.s4 1966171168
    %v1037 = vunpack.c.0.s8 %v1036
    %v1038 = vlaneseq
    %v1039 = vshrl.u32 %v1038, 7
    %v1040 = vsub.s32 %v1037, %v1039
    %v1041 = vrot.slane %v1034, %v1040
    %v1045 = vcombine.low %v632, %v634
    %v1047 = vunpack.c.l.s4 1966171168
    %v1048 = vunpack.c.0.s8 %v1047
    %v1049 = vlaneseq
    %v1050 = vshrl.u32 %v1049, 7
    %v1051 = vsub.s32 %v1048, %v1050
    %v1052 = vrot.slane %v1045, %v1051
    %v1054 = vunpack.c.l.s4 1966171168
    %v1055 = vunpack.c.0.s8 %v1054
    %v1056 = vlaneseq
    %v1057 = vshrl.u32 %v1056, 7
    %v1058 = vsub.s32 %v1055, %v1057
    %v1059 = vrot.slane %v1052, %v1058
    %1060 = vrot.lane.b32.xlu0 %v1059, 64
    %v1061 = vpop.permute.xlu0 %1060
    %v1065 = vcombine.low %v762, %v764
    %v1067 = vunpack.c.l.s4 1966171168
    %v1068 = vunpack.c.0.s8 %v1067
    %v1069 = vlaneseq
    %v1070 = vshrl.u32 %v1069, 7
    %v1071 = vsub.s32 %v1068, %v1070
    %v1072 = vrot.slane %v1065, %v1071
    %v1074 = vunpack.c.l.s4 1966171168
    %v1075 = vunpack.c.0.s8 %v1074
    %v1076 = vlaneseq
    %v1077 = vshrl.u32 %v1076, 7
    %v1078 = vsub.s32 %v1075, %v1077
    %v1079 = vrot.slane %v1072, %v1078
    %v1083 = vcombine.low %v892, %v894
    %v1085 = vunpack.c.l.s4 1966171168
    %v1086 = vunpack.c.0.s8 %v1085
    %v1087 = vlaneseq
    %v1088 = vshrl.u32 %v1087, 7
    %v1089 = vsub.s32 %v1086, %v1088
    %v1090 = vrot.slane %v1083, %v1089
    %v1092 = vunpack.c.l.s4 1966171168
    %v1093 = vunpack.c.0.s8 %v1092
    %v1094 = vlaneseq
    %v1095 = vshrl.u32 %v1094, 7
    %v1096 = vsub.s32 %v1093, %v1095
    %v1097 = vrot.slane %v1090, %v1096
    %1098 = vrot.lane.b32.xlu0 %v1097, 64
    %v1099 = vpop.permute.xlu0 %1098
    %v1103 = vcombine.low %v1022, %v1024
    %v1105 = vunpack.c.l.s4 1966171168
    %v1106 = vunpack.c.0.s8 %v1105
    %v1107 = vlaneseq
    %v1108 = vshrl.u32 %v1107, 7
    %v1109 = vsub.s32 %v1106, %v1108
    %v1110 = vrot.slane %v1103, %v1109
    %v1112 = vunpack.c.l.s4 1966171168
    %v1113 = vunpack.c.0.s8 %v1112
    %v1114 = vlaneseq
    %v1115 = vshrl.u32 %v1114, 7
    %v1116 = vsub.s32 %v1113, %v1115
    %v1117 = vrot.slane %v1110, %v1116
    %v1118 = vsel %vm390, %v1041, %v1061
    %v1119 = vsel %vm390, %v1079, %v1099
    %v1120 = vld [vmem:[%s5] sm:$0x1]
    %v1122 = vlaneseq
    %v1123 = vshrl.u32 %v1122, 7
    %v1124 = vsub.s32 0, %v1123
    %v1125 = vrot.slane %v1120, %v1124
    %v1127 = vsel %vm390, %v1117, 0
    %1129 = vmatprep.subr.mxu0 0.0
    %1130 = vmatpush1.msra.mxu0 %v32
    %1131 = vmatprep.subr.mxu0 0.0
    %1132 = vmatpush1.msra.mxu0 %v33
    %1133 = vmatprep.subr.mxu0 0.0
    %1134 = vmatpush1.msra.mxu0 %v34
    %1135 = vmatprep.subr.mxu0 0.0
    %1136 = vmatpush1.msra.mxu0 %v35
    %1137 = vmatprep.subr.mxu0 0.0
    %1138 = vmatpush1.msra.mxu0 %v36
    %1139 = vmatprep.subr.mxu0 0.0
    %1140 = vmatpush1.msra.mxu0 %v37
    %1141 = vmatprep.subr.mxu0 0.0
    %1142 = vmatpush1.msra.mxu0 %v38
    %1143 = vmatprep.subr.mxu0 0.0
    %1144 = vmatpush1.msra.mxu0 %v39
    %1145 = vmatprep.subr.mxu0 0.0
    %1146 = vmatpush1.msra.mxu0 %v40
    %1147 = vmatprep.subr.mxu0 0.0
    %1148 = vmatpush1.msra.mxu0 %v41
    %1149 = vmatprep.subr.mxu0 0.0
    %1150 = vmatpush1.msra.mxu0 %v42
    %1151 = vmatprep.subr.mxu0 0.0
    %1152 = vmatpush1.msra.mxu0 %v43
    %1153 = vmatprep.subr.mxu0 0.0
    %1154 = vmatpush1.msra.mxu0 %v44
    %1155 = vmatprep.subr.mxu0 0.0
    %1156 = vmatpush1.msra.mxu0 %v45
    %1157 = vmatprep.subr.mxu0 0.0
    %1158 = vmatpush1.msra.mxu0 %v46
    %1159 = vmatprep.subr.mxu0 0.0
    %1160 = vmatpush1.msra.mxu0 %v47
    %1161 = vmatprep.subr.mxu0 0.0
    %1162 = vmatpush1.msra.mxu0 %v48
    %1163 = vmatprep.subr.mxu0 0.0
    %1164 = vmatpush1.msra.mxu0 %v49
    %1165 = vmatprep.subr.mxu0 0.0
    %1166 = vmatpush1.msra.mxu0 %v50
    %1167 = vmatprep.subr.mxu0 0.0
    %1168 = vmatpush1.msra.mxu0 %v51
    %1169 = vmatprep.subr.mxu0 0.0
    %1170 = vmatpush1.msra.mxu0 %v52
    %1171 = vmatprep.subr.mxu0 0.0
    %1172 = vmatpush1.msra.mxu0 %v53
    %1173 = vmatprep.subr.mxu0 0.0
    %1174 = vmatpush1.msra.mxu0 %v54
    %1175 = vmatprep.subr.mxu0 0.0
    %1176 = vmatpush1.msra.mxu0 %v55
    %1177 = vmatprep.subr.mxu0 0.0
    %1178 = vmatpush1.msra.mxu0 %v56
    %1179 = vmatprep.subr.mxu0 0.0
    %1180 = vmatpush1.msra.mxu0 %v57
    %1181 = vmatprep.subr.mxu0 0.0
    %1182 = vmatpush1.msra.mxu0 %v58
    %1183 = vmatprep.subr.mxu0 0.0
    %1184 = vmatpush1.msra.mxu0 %v59
    %1185 = vmatprep.subr.mxu0 0.0
    %1186 = vmatpush1.msra.mxu0 %v60
    %1187 = vmatprep.subr.mxu0 0.0
    %1188 = vmatpush1.msra.mxu0 %v61
    %1189 = vmatprep.subr.mxu0 0.0
    %1190 = vmatpush1.msra.mxu0 %v62
    %1191 = vmatprep.subr.mxu0 0.0
    %1192 = vmatpush1.msra.mxu0 %v63
    %1193 = vmatprep.mubr.f32.mxu0 %v1119
    %1194 = vmatmul.mubr.f32.gmra.mrb[0].mxu0 %v1118
    %v1195 = vpop.f32.mrb[0].mxu0
    %v1196 = vadd.f32 %v1125, %v1195
    %v1197 = vpop.f32.mrb[0].mxu0
    %1198 = vdwg.mxu0
    %1199 = vmatprep.subr.mxu0 0.0
    %1200 = vmatpush1.msra.mxu0 %v64
    %1201 = vmatprep.subr.mxu0 0.0
    %1202 = vmatpush1.msra.mxu0 %v65
    %1203 = vmatprep.subr.mxu0 0.0
    %1204 = vmatpush1.msra.mxu0 %v66
    %1205 = vmatprep.subr.mxu0 0.0
    %1206 = vmatpush1.msra.mxu0 %v67
    %1207 = vmatprep.subr.mxu0 0.0
    %1208 = vmatpush1.msra.mxu0 %v68
    %1209 = vmatprep.subr.mxu0 0.0
    %1210 = vmatpush1.msra.mxu0 %v69
    %1211 = vmatprep.subr.mxu0 0.0
    %1212 = vmatpush1.msra.mxu0 %v70
    %1213 = vmatprep.subr.mxu0 0.0
    %1214 = vmatpush1.msra.mxu0 %v71
    %1215 = vmatprep.subr.mxu0 0.0
    %1216 = vmatpush1.msra.mxu0 0.0
    %1217 = vmatprep.subr.mxu0 0.0
    %1218 = vmatpush1.msra.mxu0 0.0
    %1219 = vmatprep.subr.mxu0 0.0
    %1220 = vmatpush1.msra.mxu0 0.0
    %1221 = vmatprep.subr.mxu0 0.0
    %1222 = vmatpush1.msra.mxu0 0.0
    %1223 = vmatprep.subr.mxu0 0.0
    %1224 = vmatpush1.msra.mxu0 0.0
    %1225 = vmatprep.subr.mxu0 0.0
    %1226 = vmatpush1.msra.mxu0 0.0
    %1227 = vmatprep.subr.mxu0 0.0
    %1228 = vmatpush1.msra.mxu0 0.0
    %1229 = vmatprep.subr.mxu0 0.0
    %1230 = vmatpush1.msra.mxu0 0.0
    %1231 = vmatprep.subr.mxu0 0.0
    %1232 = vmatpush1.msra.mxu0 0.0
    %1233 = vmatprep.subr.mxu0 0.0
    %1234 = vmatpush1.msra.mxu0 0.0
    %1235 = vmatprep.subr.mxu0 0.0
    %1236 = vmatpush1.msra.mxu0 0.0
    %1237 = vmatprep.subr.mxu0 0.0
    %1238 = vmatpush1.msra.mxu0 0.0
    %1239 = vmatprep.subr.mxu0 0.0
    %1240 = vmatpush1.msra.mxu0 0.0
    %1241 = vmatprep.subr.mxu0 0.0
    %1242 = vmatpush1.msra.mxu0 0.0
    %1243 = vmatprep.subr.mxu0 0.0
    %1244 = vmatpush1.msra.mxu0 0.0
    %1245 = vmatprep.subr.mxu0 0.0
    %1246 = vmatpush1.msra.mxu0 0.0
    %1247 = vmatprep.subr.mxu0 0.0
    %1248 = vmatpush1.msra.mxu0 0.0
    %1249 = vmatprep.subr.mxu0 0.0
    %1250 = vmatpush1.msra.mxu0 0.0
    %1251 = vmatprep.subr.mxu0 0.0
    %1252 = vmatpush1.msra.mxu0 0.0
    %1253 = vmatprep.subr.mxu0 0.0
    %1254 = vmatpush1.msra.mxu0 0.0
    %1255 = vmatprep.subr.mxu0 0.0
    %1256 = vmatpush1.msra.mxu0 0.0
    %1257 = vmatprep.subr.mxu0 0.0
    %1258 = vmatpush1.msra.mxu0 0.0
    %1259 = vmatprep.subr.mxu0 0.0
    %1260 = vmatpush1.msra.mxu0 0.0
    %1261 = vmatprep.subr.mxu0 0.0
    %1262 = vmatpush1.msra.mxu0 0.0
    %1263 = vmatprep.mubr.f32.mxu0 0.0
    %1264 = vmatmul.mubr.f32.gmra.mrb[0].mxu0 %v1127
    %v1265 = vpop.f32.mrb[0].mxu0
    %v1266 = vadd.f32 %v1196, %v1265
    %v1267 = vpop.f32.mrb[0].mxu0
    %1268 = vdwg.mxu0
    %vm1269 = vcmask 74752
    %1270 = vst.msk [vmem:[#allocation2] sm:$0x3] %vm1269, %v1266
    // Predicated region
    $region26: #{tpu_custom_call.1} parent=1 // pred_check
      _
    $region27: #{tpu_custom_call.1} parent=1 // pred_check_branch
      %1272 = sbr.rel (0) target = $region29
    $region28: #{tpu_custom_call.1} parent=1 // pred_region
      %s1274 = ssub.s32 32, 32
      %1275 = vsyncadd [#allocation3], %s1274
      %s1277 = sshll.u32 [#allocation2], 4
      %s1278 = int_to_ptr.vmem [resolvable:$true] %s1277
      %1280 = dma.vmem_to_hbm [thread:$0]  %s1278, 32, %s6, [#allocation3]
    $region29: #{tpu_custom_call.1} parent=1 // pred_fallthru
      _
    // Predicated region
    $region30: #{tpu_custom_call.1} parent=1 // pred_check
      _
    $region31: #{tpu_custom_call.1} parent=1 // pred_check_branch
      %1282 = sbr.rel (0) target = $region33
    $region32: #{tpu_custom_call.1} parent=1 // pred_region
      %1283 = dma.done [#allocation3], 32
    $region33: #{tpu_custom_call.1} parent=1 // pred_fallthru
      _
    %1284 = vsyncpa [#allocation3], 1

</llo_original>
